<compile_context>
chip_gen: v7x
topology: tpu7x:2x2x1
jax: 0.10.0
libtpu: 0.0.40
codegen_flags: <defaults>
</compile_context>

<pallas_src>
import functools

import jax
import jax.numpy as jnp
import numpy as np
from jax import lax
from jax.experimental import pallas as pl
from jax.experimental.pallas import tpu as pltpu

MARGIN = 1.0


def _instance_metric_loss_kernel(x_ref, neg_mask_ref, pos_mask_ref, row_scale_ref,
                                 o_ref, *, margin):
    B = x_ref.shape[0]
    x = x_ref[...]  # keep stored dtype; MXU accumulates in f32 below

    # Cosine similarity matrix (inverted-loss variant divides by 128, per CONF).
    # Contract dim 1 of both operands -> x @ x.T without materializing x.T.
    Dm = lax.dot_general(
        x, x, (((1,), (1,)), ((), ())),
        preferred_element_type=jnp.float32) * (1.0 / 128.0)            # (B, B)
    Dexpm = jnp.exp(margin + Dm)                                        # (B, B)

    # Two masked row reductions (masks are precomputed constants):
    #   S[r]    = sum of the "negative" exp-similarities drawn from row r
    #   Dpos[r] = D[r, r+1] for even r (the positive pair), 0 on odd rows
    S = jnp.sum(Dexpm * neg_mask_ref[...], axis=1, keepdims=True)      # (B, 1)
    Dpos = jnp.sum(Dm * pos_mask_ref[...], axis=1, keepdims=True)      # (B, 1)

    # Pair dissimilarity for even row r: Dissim = S[r] + S[r+1].
    # Sublane roll + add (replaces the old pair_mat @ S matmul). Odd rows hold
    # garbage (always > 0, so the log is safe) and are zeroed by row_scale.
    T = S + pltpu.roll(S, shift=B - 1, axis=0)                          # (B, 1)

    # Inverted loss: J = log(1e-8 + Dissim) - D[pos_pair]
    J = jnp.log(1e-8 + T) - Dpos                                        # (B, 1)

    # row_scale folds the even-row selection AND the final 1/batch_size.
    contrib = row_scale_ref[...] * jnp.square(jnp.maximum(J, 0.0))      # (B, 1)

    o_ref[0] = jnp.sum(contrib)                                         # scalar -> SMEM


def _build_index_masks(batch_size):
    """Host-side constants mirroring the PyTorch index arithmetic."""
    r = np.arange(batch_size)[:, None]
    c = np.arange(batch_size)[None, :]
    even_r = (r % 2) == 0
    odd_c = (c % 2) == 1
    # neg_i: even row r (=pos_i), odd cols 2k+1 with k != pos_j -> exclude c == 2r+3
    mask_i = even_r & odd_c & (c != 2 * r + 3)
    # neg_j: odd row r (=pos_j), even cols 2l with l != pos_i   -> exclude c == 2r-2
    mask_j = (~even_r) & (~odd_c) & (c != 2 * r - 2)
    neg_mask = (mask_i | mask_j).astype(np.float32)                     # (B, B)
    pos_mask = (even_r & (c == r + 1)).astype(np.float32)               # (B, B)
    row_scale = even_r.astype(np.float32) / np.float32(batch_size)      # (B, 1)
    return neg_mask, pos_mask, row_scale


def instance_metric_loss(inputs, margin=1.0):
    """inputs: (batch, emb_dim) array (f32 or bf16). Returns scalar loss (f32)."""
    B, E = inputs.shape
    assert B % 2 == 0, "batch must consist of consecutive positive pairs"
    neg_mask, pos_mask, row_scale = _build_index_masks(B)
    kernel = functools.partial(_instance_metric_loss_kernel, margin=margin)
    out = pl.pallas_call(
        kernel,
        out_shape=jax.ShapeDtypeStruct((1,), jnp.float32),
        # No grid: one program instance, full arrays resident in VMEM.
        in_specs=[
            pl.BlockSpec(memory_space=pltpu.MemorySpace.VMEM),  # x
            pl.BlockSpec(memory_space=pltpu.MemorySpace.VMEM),  # neg_mask
            pl.BlockSpec(memory_space=pltpu.MemorySpace.VMEM),  # pos_mask
            pl.BlockSpec(memory_space=pltpu.MemorySpace.VMEM),  # row_scale
        ],
        out_specs=pl.BlockSpec(memory_space=pltpu.MemorySpace.SMEM),
    )(inputs, jnp.asarray(neg_mask), jnp.asarray(pos_mask), jnp.asarray(row_scale))
    return out[0]


def _reference_loss(inputs_np, margin=1.0):
    """Pure numpy mirror of the PyTorch forward (cosine + inverted loss)."""
    x = np.asarray(inputs_np, dtype=np.float64)
    B = x.shape[0]
    D = x @ x.T
    D = D / 128.0
    Dexpm = np.exp(margin + D)
    Dflat = Dexpm.reshape(-1)
    comps = []
    for pos_id in range(B // 2):
        pos_i = pos_id * 2
        pos_j = pos_id * 2 + 1
        neg_i = [pos_i * B + k * 2 + 1 for k in range(B // 2) if k != pos_j]
        neg_j = [pos_j * B + l * 2 for l in range(B // 2) if l != pos_i]
        dissim = Dflat[neg_i].sum() + Dflat[neg_j].sum()
        J_ij = np.log(1e-8 + dissim) - D[pos_i, pos_j]
        comps.append(max(J_ij, 0.0) ** 2)
    return np.sum(comps) / B


if __name__ == "__main__":
    key = jax.random.PRNGKey(0)
    B, E = 8, 128  # batch of 8 embeddings (4 positive pairs), 128-dim embeddings
    x = jax.random.normal(key, (B, E), dtype=jnp.float32)
    # L2-normalize (cosine-distance setting expects unit embeddings)
    x = x / jnp.linalg.norm(x, axis=1, keepdims=True)

    loss = jax.block_until_ready(instance_metric_loss(x, margin=MARGIN))

    ref = _reference_loss(np.asarray(x), margin=MARGIN)
    assert np.allclose(float(loss), ref, rtol=1e-4, atol=1e-5), (float(loss), ref)

    print("KERNEL_OK")
</pallas_src>

<mosaic_0001>
module attributes {stable_mosaic.version = 11 : i64} {
  func.func @_instance_metric_loss_kernel(%arg0: memref<8x128xf32, #tpu.memory_space<vmem>>, %arg1: memref<8x8xf32, #tpu.memory_space<vmem>>, %arg2: memref<8x8xf32, #tpu.memory_space<vmem>>, %arg3: memref<8x1xf32, #tpu.memory_space<vmem>>, %arg4: memref<1xf32, #tpu.memory_space<smem>>) attributes {dimension_semantics = [], scalar_prefetch = 0 : i64, scratch_operands = 0 : i64, tpu.core_type = #tpu.core_type<tc>} {
    %c0 = arith.constant 0 : index
    %c0_0 = arith.constant 0 : index
    %0 = vector.load %arg0[%c0, %c0_0] : memref<8x128xf32, #tpu.memory_space<vmem>>, vector<8x128xf32>
    %cst = arith.constant dense<0.000000e+00> : vector<8x8xf32>
    %1 = tpu.matmul %0, %0, %cst {dimension_numbers = #tpu.dot_dimension_numbers<[1], [1], [0], [0], [0, 0, 1, 0], [], []>} : vector<8x128xf32>, vector<8x128xf32>, vector<8x8xf32> -> vector<8x8xf32>
    %cst_1 = arith.constant 7.812500e-03 : f32
    %2 = vector.broadcast %cst_1 : f32 to vector<8x8xf32>
    %3 = arith.mulf %1, %2 : vector<8x8xf32>
    %cst_2 = arith.constant 1.000000e+00 : f32
    %4 = vector.broadcast %cst_2 : f32 to vector<8x8xf32>
    %5 = arith.addf %4, %3 : vector<8x8xf32>
    %6 = math.exp %5 : vector<8x8xf32>
    %c0_3 = arith.constant 0 : index
    %c0_4 = arith.constant 0 : index
    %7 = vector.load %arg1[%c0_3, %c0_4] : memref<8x8xf32, #tpu.memory_space<vmem>>, vector<8x8xf32>
    %8 = arith.mulf %6, %7 : vector<8x8xf32>
    %cst_5 = arith.constant dense<0.000000e+00> : vector<8xf32>
    %9 = vector.multi_reduction <add>, %8, %cst_5 [1] : vector<8x8xf32> to vector<8xf32>
    %10 = vector.shape_cast %9 : vector<8xf32> to vector<8x1xf32>
    %c0_6 = arith.constant 0 : index
    %c0_7 = arith.constant 0 : index
    %11 = vector.load %arg2[%c0_6, %c0_7] : memref<8x8xf32, #tpu.memory_space<vmem>>, vector<8x8xf32>
    %12 = arith.mulf %3, %11 : vector<8x8xf32>
    %cst_8 = arith.constant dense<0.000000e+00> : vector<8xf32>
    %13 = vector.multi_reduction <add>, %12, %cst_8 [1] : vector<8x8xf32> to vector<8xf32>
    %14 = vector.shape_cast %13 : vector<8xf32> to vector<8x1xf32>
    %c7_i32 = arith.constant 7 : i32
    %15 = tpu.dynamic_rotate %10 by %c7_i32 dim 0 : vector<8x1xf32>, i32 -> vector<8x1xf32>
    %16 = arith.addf %10, %15 : vector<8x1xf32>
    %cst_9 = arith.constant 9.99999993E-9 : f32
    %17 = vector.broadcast %cst_9 : f32 to vector<8x1xf32>
    %18 = arith.addf %17, %16 : vector<8x1xf32>
    %19 = math.log %18 : vector<8x1xf32>
    %20 = arith.subf %19, %14 : vector<8x1xf32>
    %c0_10 = arith.constant 0 : index
    %c0_11 = arith.constant 0 : index
    %21 = vector.load %arg3[%c0_10, %c0_11] : memref<8x1xf32, #tpu.memory_space<vmem>>, vector<8x1xf32>
    %cst_12 = arith.constant 0.000000e+00 : f32
    %22 = vector.broadcast %cst_12 : f32 to vector<8x1xf32>
    %23 = arith.maximumf %20, %22 : vector<8x1xf32>
    %24 = arith.mulf %23, %23 : vector<8x1xf32>
    %25 = arith.mulf %21, %24 : vector<8x1xf32>
    %26 = vector.shape_cast %25 : vector<8x1xf32> to vector<1x8x1xf32>
    %cst_13 = arith.constant dense<0.000000e+00> : vector<1xf32>
    %27 = vector.multi_reduction <add>, %26, %cst_13 [1, 2] : vector<1x8x1xf32> to vector<1xf32>
    %28 = vector.shape_cast %27 : vector<1xf32> to vector<1x1x1xf32>
    %29 = vector.extract %28[0, 0, 0] : f32 from vector<1x1x1xf32>
    %c0_14 = arith.constant 0 : index
    %30 = memref.load %arg4[%c0_14] : memref<1xf32, #tpu.memory_space<smem>>
    memref.store %29, %arg4[%c0_14] : memref<1xf32, #tpu.memory_space<smem>>
    return
  }
}

</mosaic_0001>

<llo_original>
// kernel: tpu_custom_call.1
$region0: #{tpu_custom_call.1}
  #allocation0 [shape = 'u32[]', space=smem, size = 0x4, offset = 0x4, fixed_abs, tag = 'smem constant byte address 0x4 - core index']
  #allocation1 [shape = 'u32[144,128]{1,0:T(1,128)}', space=vmem, size = 0x12000, scoped, tag = 'internal scratch']
  %s0 = inlined_call_operand.vmem [shape: f32[8,128], index: 0, kind: input, shape index: {}]
  %s1 = inlined_call_operand.hbm [shape: f32[8,8], index: 1, kind: input, shape index: {}]
  %s2 = inlined_call_operand.vmem [shape: f32[8,8], index: 2, kind: input, shape index: {}]
  %s3 = inlined_call_operand.vmem [shape: f32[8,1], index: 3, kind: input, shape index: {}]
  %s4 = inlined_call_operand.hbm [shape: f32[1], index: 4, kind: output, shape index: {}]
  %s5 = sld [smem:[#allocation0]]
  $region30: #{tpu_custom_call.1} parent=0
    _
  %s7 = ssub.s32 1, %s5
  %s8 = scalar_select 0, %s7, %s5
  $region1: #{tpu_custom_call.1} parent=0
    #allocation2 [shape = 'u8[4096]{0}', space=vmem, size = 0x1000, scoped, tag = 'input window, operand 1, single buffered']
    #allocation3 [shape = 's32[1]{0}', space=sflag, size = 0x4, scoped, tag = 'scoped memory for tpu_custom_call.1']
    #allocation4 [shape = 's32[1]{0}', space=sflag, size = 0x4, scoped, tag = 'scoped memory for tpu_custom_call.1']
    #allocation5 [shape = 'u8[512]{0}', space=smem, size = 0x200, scoped, tag = 'output window, operand 0, single buffered']
    %9 = vsyncpa [#allocation3], 0
    %10 = vsyncpa [#allocation4], 0
    // Predicated region
    $region2: #{tpu_custom_call.1} parent=1 // pred_check
      _
    $region3: #{tpu_custom_call.1} parent=1 // pred_check_branch
      %12 = sbr.rel (0) target = $region5
    $region4: #{tpu_custom_call.1} parent=1 // pred_region
      _
    $region5: #{tpu_custom_call.1} parent=1 // pred_fallthru
      _
    // Predicated region
    $region6: #{tpu_custom_call.1} parent=1 // pred_check
      _
    $region7: #{tpu_custom_call.1} parent=1 // pred_check_branch
      %14 = sbr.rel (0) target = $region9
    $region8: #{tpu_custom_call.1} parent=1 // pred_region
      %s16 = ssub.s32 128, 128
      %17 = vsyncadd [#allocation3], %s16
      %s19 = sshll.u32 [#allocation2], 4
      %s20 = int_to_ptr.vmem [resolvable:$true] %s19
      %22 = dma.hbm_to_vmem [thread:$0]  %s1, 128, %s20, [#allocation3]
    $region9: #{tpu_custom_call.1} parent=1 // pred_fallthru
      _
    // Predicated region
    $region10: #{tpu_custom_call.1} parent=1 // pred_check
      _
    $region11: #{tpu_custom_call.1} parent=1 // pred_check_branch
      %24 = sbr.rel (0) target = $region13
    $region12: #{tpu_custom_call.1} parent=1 // pred_region
      _
    $region13: #{tpu_custom_call.1} parent=1 // pred_fallthru
      _
    // Predicated region
    $region14: #{tpu_custom_call.1} parent=1 // pred_check
      _
    $region15: #{tpu_custom_call.1} parent=1 // pred_check_branch
      %26 = sbr.rel (0) target = $region17
    $region16: #{tpu_custom_call.1} parent=1 // pred_region
      _
    $region17: #{tpu_custom_call.1} parent=1 // pred_fallthru
      _
    // Predicated region
    $region18: #{tpu_custom_call.1} parent=1 // pred_check
      _
    $region19: #{tpu_custom_call.1} parent=1 // pred_check_branch
      %28 = sbr.rel (0) target = $region21
    $region20: #{tpu_custom_call.1} parent=1 // pred_region
      %29 = dma.done [#allocation3], 128
    $region21: #{tpu_custom_call.1} parent=1 // pred_fallthru
      _
    %v30 = vld [vmem:[%s0] sm:$0xff]
    %31 = vmatprep.subr.mxu0 0.0
    %32 = vmatpush1.xpose.msra.mxu0 %v30
    %33 = vmatprep.subr.mxu0 0.0
    %34 = vmatpush1.xpose.msra.mxu0 0.0
    %35 = vmatprep.subr.mxu0 0.0
    %36 = vmatpush1.xpose.msra.mxu0 0.0
    %37 = vmatprep.subr.mxu0 0.0
    %38 = vmatpush1.xpose.msra.mxu0 0.0
    %39 = vmatprep.subr.mxu0 0.0
    %40 = vmatpush1.xpose.msra.mxu0 0.0
    %41 = vmatprep.subr.mxu0 0.0
    %42 = vmatpush1.xpose.msra.mxu0 0.0
    %43 = vmatprep.subr.mxu0 0.0
    %44 = vmatpush1.xpose.msra.mxu0 0.0
    %45 = vmatprep.subr.mxu0 0.0
    %46 = vmatpush1.xpose.msra.mxu0 0.0
    %47 = vmatprep.subr.mxu0 0.0
    %48 = vmatpush1.xpose.msra.mxu0 0.0
    %49 = vmatprep.subr.mxu0 0.0
    %50 = vmatpush1.xpose.msra.mxu0 0.0
    %51 = vmatprep.subr.mxu0 0.0
    %52 = vmatpush1.xpose.msra.mxu0 0.0
    %53 = vmatprep.subr.mxu0 0.0
    %54 = vmatpush1.xpose.msra.mxu0 0.0
    %55 = vmatprep.subr.mxu0 0.0
    %56 = vmatpush1.xpose.msra.mxu0 0.0
    %57 = vmatprep.subr.mxu0 0.0
    %58 = vmatpush1.xpose.msra.mxu0 0.0
    %59 = vmatprep.subr.mxu0 0.0
    %60 = vmatpush1.xpose.msra.mxu0 0.0
    %61 = vmatprep.subr.mxu0 0.0
    %62 = vmatpush1.xpose.msra.mxu0 0.0
    %63 = vmatprep.subr.mxu0 0.0
    %64 = vmatpush1.xpose.msra.mxu0 0.0
    %65 = vmatprep.subr.mxu0 0.0
    %66 = vmatpush1.xpose.msra.mxu0 0.0
    %67 = vmatprep.subr.mxu0 0.0
    %68 = vmatpush1.xpose.msra.mxu0 0.0
    %69 = vmatprep.subr.mxu0 0.0
    %70 = vmatpush1.xpose.msra.mxu0 0.0
    %71 = vmatprep.subr.mxu0 0.0
    %72 = vmatpush1.xpose.msra.mxu0 0.0
    %73 = vmatprep.subr.mxu0 0.0
    %74 = vmatpush1.xpose.msra.mxu0 0.0
    %75 = vmatprep.subr.mxu0 0.0
    %76 = vmatpush1.xpose.msra.mxu0 0.0
    %77 = vmatprep.subr.mxu0 0.0
    %78 = vmatpush1.xpose.msra.mxu0 0.0
    %79 = vmatprep.subr.mxu0 0.0
    %80 = vmatpush1.xpose.msra.mxu0 0.0
    %81 = vmatprep.subr.mxu0 0.0
    %82 = vmatpush1.xpose.msra.mxu0 0.0
    %83 = vmatprep.subr.mxu0 0.0
    %84 = vmatpush1.xpose.msra.mxu0 0.0
    %85 = vmatprep.subr.mxu0 0.0
    %86 = vmatpush1.xpose.msra.mxu0 0.0
    %87 = vmatprep.subr.mxu0 0.0
    %88 = vmatpush1.xpose.msra.mxu0 0.0
    %89 = vmatprep.subr.mxu0 0.0
    %90 = vmatpush1.xpose.msra.mxu0 0.0
    %91 = vmatprep.subr.mxu0 0.0
    %92 = vmatpush1.xpose.msra.mxu0 0.0
    %93 = vmatprep.subr.mxu0 0.0
    %94 = vmatpush1.xpose.msra.mxu0 0.0
    %95 = vmatprep.mubr.f32.mxu0 0.0
    %96 = vmatmul.mubr.f32.gmra.mrb[0].mxu0 %v30
    %v97 = vpop.f32.mrb[0].mxu0
    %v98 = vadd.f32 0.0, %v97
    %v99 = vpop.f32.mrb[0].mxu0
    %100 = vdwg.mxu0
    %v101 = vmul.f32 %v98, 0.0078125
    %v102 = vadd.f32 %v101, 1.0
    %v103 = vmul.f32 %v102, 1.442695
    %v104 = vpow.pop %v103
    %v105 = vld [vmem:[#allocation2] sm:$0xff]
    %v106 = vmul.f32 %v104, %v105
    %vm107 = vcmask 64512
    %v108 = vsel %vm107, %v106, 0.0
    %109 = vadd.xlane.f32.xlu0 %v108
    %v110 = vpop.xlane.xlu0 %109
    %v111 = vld [vmem:[%s2] sm:$0xff]
    %v112 = vmul.f32 %v101, %v111
    %v113 = vsel %vm107, %v112, 0.0
    %114 = vadd.xlane.f32.xlu0 %v113
    %v115 = vpop.xlane.xlu0 %114
    %v116 = vrot.slane %v110, 1
    %v117 = vadd.f32 %v110, %v116
    %v118 = vadd.f32 %v117, 1e-08
    %v119 = vlog2.pop %v118
    %v120 = vmul.f32 %v119, 0.6931472
    %v121 = vsub.f32 %v120, %v115
    %v122 = vld [vmem:[%s3] sm:$0xff]
    %v123 = vmax.f32 %v121, 0.0
    %v124 = vmul.f32 %v123, %v123
    %v125 = vmul.f32 %v122, %v124
    %vm126 = vcmask 7168
    %v127 = vsel %vm126, %v125, 0.0
    %128 = vadd.xlane.f32.xlu0 %v127
    %v129 = vpop.xlane.xlu0 %128
    %v130 = vrot.slane %v129, 4
    %v131 = vadd.f32 %v129, %v130
    %v132 = vrot.slane %v131, 2
    %v133 = vadd.f32 %v131, %v132
    %v134 = vrot.slane %v133, 1
    %v135 = vadd.f32 %v133, %v134
    %s136 = vtos %v135
    %s137 = scalar_lea.smem [#allocation5], 0
    %138 = sst [smem:[%s137]] %s136
    // Predicated region
    $region22: #{tpu_custom_call.1} parent=1 // pred_check
      _
    $region23: #{tpu_custom_call.1} parent=1 // pred_check_branch
      %140 = sbr.rel (0) target = $region25
    $region24: #{tpu_custom_call.1} parent=1 // pred_region
      %s142 = ssub.s32 16, 16
      %143 = vsyncadd [#allocation4], %s142
      %146 = dma.smem_to_hbm [#allocation5], 16, %s4, [#allocation4]
    $region25: #{tpu_custom_call.1} parent=1 // pred_fallthru
      _
    // Predicated region
    $region26: #{tpu_custom_call.1} parent=1 // pred_check
      _
    $region27: #{tpu_custom_call.1} parent=1 // pred_check_branch
      %148 = sbr.rel (0) target = $region29
    $region28: #{tpu_custom_call.1} parent=1 // pred_region
      %149 = dma.done [#allocation4], 16
    $region29: #{tpu_custom_call.1} parent=1 // pred_fallthru
      _
    %150 = sfence
    %151 = vsyncpa [#allocation3], 1
    %152 = vsyncpa [#allocation4], 1

</llo_original>
